<compile_context>
chip_gen: v5e
topology: v5e:2x2
jax: 0.10.0
libtpu: 0.0.40
codegen_flags: <defaults>
</compile_context>

<pallas_src>
import functools

import jax
import jax.numpy as jnp
from jax.experimental import pallas as pl
from jax.experimental.pallas import tpu as pltpu

NUM_COLORS = 2
TILES_PER_SIDE = NUM_COLORS * NUM_COLORS          # 4 -> 4x4 = 16 tiles
NUM_TILES = TILES_PER_SIDE * TILES_PER_SIDE       # 16


def _render_kernel(tile_idx_ref, x_ref, o_ref, *, Mr, Mc, tw):
    # One grid step = one output *row* of tiles (Mc tiles).
    #   tile_idx_ref : SMEM (B*Mr*Mc,) int32, scalar-prefetched tile ids.
    #   x_ref        : VMEM (1, 16, C, th, tw) resident template (per batch item).
    #   o_ref        : VMEM (1, C, th, Mc*tw)  lane-dense output row block.
    b = pl.program_id(0)
    i = pl.program_id(1)
    base = (b * Mr + i) * Mc
    # Mc is a small static constant -> unrolled; output slices are static,
    # only the template tile index is dynamic (untiled leading dim -> cheap).
    for j in range(Mc):
        t = tile_idx_ref[base + j]
        o_ref[0, :, :, j * tw:(j + 1) * tw] = x_ref[0, t]


def _to_tile_layout(x, th, tw):
    """(B, C, 4*th, 4*tw) -> (B, 16, C, th, tw): one contiguous chunk per tile."""
    B, C, H, W = x.shape
    gr, gc = H // th, W // tw
    xt = x.reshape(B, C, gr, th, gc, tw)
    xt = jnp.transpose(xt, (0, 2, 4, 1, 3, 5))        # (B, gr, gc, C, th, tw)
    return xt.reshape(B, gr * gc, C, th, tw)


def render_wang_map(x, tile_idx, map_size):
    """x: (B, C, H, W) template; tile_idx: (B, Mr, Mc) int32 flat tile ids."""
    B, C, H, W = x.shape
    Mr, Mc = map_size
    th, tw = H // TILES_PER_SIDE, W // TILES_PER_SIDE

    x_tiles = _to_tile_layout(x, th, tw)                      # (B, 16, C, th, tw)
    tile_idx_flat = tile_idx.reshape(-1).astype(jnp.int32)    # (B*Mr*Mc,) -> SMEM

    itemsize = jnp.dtype(x.dtype).itemsize
    tmpl_block_bytes = NUM_TILES * C * th * tw * itemsize
    row_block_bytes = C * th * Mc * tw * itemsize
    out_bytes = B * C * Mr * th * Mc * tw * itemsize
    in_bytes = B * NUM_TILES * C * th * tw * itemsize

    def in_map(b, i, idx_ref):        # template resident: re-DMA only when b changes
        return (b, 0, 0, 0, 0)

    def out_map(b, i, idx_ref):       # one lane-dense row of the output map
        return (b, 0, i, 0)

    grid_spec = pltpu.PrefetchScalarGridSpec(
        num_scalar_prefetch=1,
        grid=(B, Mr),
        in_specs=[pl.BlockSpec((1, NUM_TILES, C, th, tw), in_map)],
        out_specs=pl.BlockSpec((1, C, th, Mc * tw), out_map),
    )

    kernel = functools.partial(_render_kernel, Mr=Mr, Mc=Mc, tw=tw)

    return pl.pallas_call(
        kernel,
        out_shape=jax.ShapeDtypeStruct((B, C, Mr * th, Mc * tw), x.dtype),
        grid_spec=grid_spec,
        compiler_params=pltpu.CompilerParams(
            dimension_semantics=("parallel", "parallel"),
            vmem_limit_bytes=max(2 * (tmpl_block_bytes + row_block_bytes) + (2 << 20),
                                 16 << 20),
        ),
        cost_estimate=pl.CostEstimate(
            flops=0,
            transcendentals=0,
            bytes_accessed=in_bytes + out_bytes + tile_idx_flat.size * 4,
        ),
    )(tile_idx_flat, x_tiles)


def wang_map_stochastic_scanline(key, map_size):
    """Edge-mode stochastic scanline: returns (Mr, Mc) flat tile ids in [0, 16)."""
    Mr, Mc = map_size
    ks, ke, kn, kw = jax.random.split(key, 4)
    south = jax.random.randint(ks, (Mr, Mc), 0, NUM_COLORS)
    east = jax.random.randint(ke, (Mr, Mc), 0, NUM_COLORS)
    north0 = jax.random.randint(kn, (1, Mc), 0, NUM_COLORS)
    west0 = jax.random.randint(kw, (Mr, 1), 0, NUM_COLORS)
    north = jnp.concatenate([north0, south[:-1, :]], axis=0)   # n(i,j) = s(i-1,j)
    west = jnp.concatenate([west0, east[:, :-1]], axis=1)      # w(i,j) = e(i,j-1)
    return (((north * NUM_COLORS + east) * NUM_COLORS + south) * NUM_COLORS + west)


def random_wang_map(x, map_size, key):
    """Forward pass. x: (C,H,W) or (B,C,H,W)."""
    squeeze = False
    if x.ndim == 3:
        x = x[None]
        squeeze = True
    elif x.ndim != 4:
        raise ValueError(f"Expected 3 or 4 dims, got {x.shape}")
    B = x.shape[0]
    keys = jax.random.split(key, B)
    tile_idx = jax.vmap(lambda k: wang_map_stochastic_scanline(k, map_size))(keys)
    out = render_wang_map(x, tile_idx, map_size)
    return (out[0] if squeeze else out), tile_idx


if __name__ == "__main__":
    key = jax.random.PRNGKey(0)
    B, C = 2, 3
    th, tw = 8, 128                                     # TPU-friendly tile size
    H, W = TILES_PER_SIDE * th, TILES_PER_SIDE * tw     # 32 x 512 template
    map_size = (2, 3)

    kx, km = jax.random.split(key)
    x = jax.random.normal(kx, (B, C, H, W), dtype=jnp.float32)

    out, tile_idx = random_wang_map(x, map_size, km)
    out = jax.block_until_ready(out)
    assert out.shape == (B, C, map_size[0] * th, map_size[1] * tw), out.shape

    # Pure-JAX reference for the render (tile gather) path.
    tr = tile_idx // TILES_PER_SIDE
    tc = tile_idx % TILES_PER_SIDE
    ref = jnp.zeros_like(out)
    for b in range(B):
        for i in range(map_size[0]):
            for j in range(map_size[1]):
                patch = x[b, :,
                          tr[b, i, j] * th:(tr[b, i, j] + 1) * th,
                          tc[b, i, j] * tw:(tc[b, i, j] + 1) * tw]
                ref = ref.at[b, :, i * th:(i + 1) * th, j * tw:(j + 1) * tw].set(patch)
    assert jnp.allclose(out, ref), "Pallas render does not match reference"

    print("KERNEL_OK")
</pallas_src>

<mosaic_0001>
module attributes {stable_mosaic.version = 11 : i64} {
  func.func @_render_kernel(%arg0: i32, %arg1: i32, %arg2: memref<12xi32, #tpu.memory_space<smem>>, %arg3: memref<1x16x3x8x128xf32, #tpu.memory_space<vmem>>, %arg4: memref<1x3x8x384xf32, #tpu.memory_space<vmem>>) attributes {dimension_semantics = [#tpu.dimension_semantics<parallel>, #tpu.dimension_semantics<parallel>], iteration_bounds = array<i64: 2, 2>, scalar_prefetch = 1 : i64, scratch_operands = 0 : i64, tpu.core_type = #tpu.core_type<tc>, window_params = [{transform_indices = @transform_0, window_bounds = array<i64: 1, 16, 3, 8, 128>}, {transform_indices = @transform_1, window_bounds = array<i64: 1, 3, 8, 384>}]} {
    %c2_i32 = arith.constant 2 : i32
    %0 = arith.muli %arg0, %c2_i32 : i32
    %1 = arith.addi %0, %arg1 : i32
    %c3_i32 = arith.constant 3 : i32
    %2 = arith.muli %1, %c3_i32 : i32
    %c0_i32 = arith.constant 0 : i32
    %3 = arith.addi %2, %c0_i32 : i32
    %4 = arith.index_cast %3 : i32 to index
    %5 = memref.load %arg2[%4] : memref<12xi32, #tpu.memory_space<smem>>
    %c0 = arith.constant 0 : index
    %6 = arith.index_cast %5 : i32 to index
    %c0_0 = arith.constant 0 : index
    %c0_1 = arith.constant 0 : index
    %c0_2 = arith.constant 0 : index
    %7 = vector.load %arg3[%c0, %6, %c0_0, %c0_1, %c0_2] : memref<1x16x3x8x128xf32, #tpu.memory_space<vmem>>, vector<1x1x3x8x128xf32>
    %8 = vector.shape_cast %7 : vector<1x1x3x8x128xf32> to vector<3x8x128xf32>
    %c0_3 = arith.constant 0 : index
    %c0_4 = arith.constant 0 : index
    %c0_5 = arith.constant 0 : index
    %c0_6 = arith.constant 0 : index
    %9 = vector.load %arg4[%c0_3, %c0_4, %c0_5, %c0_6] : memref<1x3x8x384xf32, #tpu.memory_space<vmem>>, vector<1x3x8x128xf32>
    %10 = vector.shape_cast %9 : vector<1x3x8x128xf32> to vector<3x8x128xf32>
    %11 = vector.shape_cast %8 : vector<3x8x128xf32> to vector<1x3x8x128xf32>
    tpu.vector_store %arg4[%c0_3, %c0_4, %c0_5, %c0_6], %11 {strides = array<i32>} : memref<1x3x8x384xf32, #tpu.memory_space<vmem>>, vector<1x3x8x128xf32>,
    %c1_i32 = arith.constant 1 : i32
    %12 = arith.addi %2, %c1_i32 : i32
    %13 = arith.index_cast %12 : i32 to index
    %14 = memref.load %arg2[%13] : memref<12xi32, #tpu.memory_space<smem>>
    %c0_7 = arith.constant 0 : index
    %15 = arith.index_cast %14 : i32 to index
    %c0_8 = arith.constant 0 : index
    %c0_9 = arith.constant 0 : index
    %c0_10 = arith.constant 0 : index
    %16 = vector.load %arg3[%c0_7, %15, %c0_8, %c0_9, %c0_10] : memref<1x16x3x8x128xf32, #tpu.memory_space<vmem>>, vector<1x1x3x8x128xf32>
    %17 = vector.shape_cast %16 : vector<1x1x3x8x128xf32> to vector<3x8x128xf32>
    %c0_11 = arith.constant 0 : index
    %c0_12 = arith.constant 0 : index
    %c0_13 = arith.constant 0 : index
    %c128 = arith.constant 128 : index
    %18 = vector.load %arg4[%c0_11, %c0_12, %c0_13, %c128] : memref<1x3x8x384xf32, #tpu.memory_space<vmem>>, vector<1x3x8x128xf32>
    %19 = vector.shape_cast %18 : vector<1x3x8x128xf32> to vector<3x8x128xf32>
    %20 = vector.shape_cast %17 : vector<3x8x128xf32> to vector<1x3x8x128xf32>
    tpu.vector_store %arg4[%c0_11, %c0_12, %c0_13, %c128], %20 {strides = array<i32>} : memref<1x3x8x384xf32, #tpu.memory_space<vmem>>, vector<1x3x8x128xf32>,
    %c2_i32_14 = arith.constant 2 : i32
    %21 = arith.addi %2, %c2_i32_14 : i32
    %22 = arith.index_cast %21 : i32 to index
    %23 = memref.load %arg2[%22] : memref<12xi32, #tpu.memory_space<smem>>
    %c0_15 = arith.constant 0 : index
    %24 = arith.index_cast %23 : i32 to index
    %c0_16 = arith.constant 0 : index
    %c0_17 = arith.constant 0 : index
    %c0_18 = arith.constant 0 : index
    %25 = vector.load %arg3[%c0_15, %24, %c0_16, %c0_17, %c0_18] : memref<1x16x3x8x128xf32, #tpu.memory_space<vmem>>, vector<1x1x3x8x128xf32>
    %26 = vector.shape_cast %25 : vector<1x1x3x8x128xf32> to vector<3x8x128xf32>
    %c0_19 = arith.constant 0 : index
    %c0_20 = arith.constant 0 : index
    %c0_21 = arith.constant 0 : index
    %c256 = arith.constant 256 : index
    %27 = vector.load %arg4[%c0_19, %c0_20, %c0_21, %c256] : memref<1x3x8x384xf32, #tpu.memory_space<vmem>>, vector<1x3x8x128xf32>
    %28 = vector.shape_cast %27 : vector<1x3x8x128xf32> to vector<3x8x128xf32>
    %29 = vector.shape_cast %26 : vector<3x8x128xf32> to vector<1x3x8x128xf32>
    tpu.vector_store %arg4[%c0_19, %c0_20, %c0_21, %c256], %29 {strides = array<i32>} : memref<1x3x8x384xf32, #tpu.memory_space<vmem>>, vector<1x3x8x128xf32>,
    return
  }
  func.func @transform_0(%arg0: i32, %arg1: i32, %arg2: memref<12xi32, #tpu.memory_space<smem>>) -> (i32, i32, i32, i32, i32) {
    %c0_i32 = arith.constant 0 : i32
    %c0_i32_0 = arith.constant 0 : i32
    %c0_i32_1 = arith.constant 0 : i32
    %c0_i32_2 = arith.constant 0 : i32
    %c0_i32_3 = arith.constant 0 : i32
    return %arg0, %c0_i32, %c0_i32_0, %c0_i32_1, %c0_i32_2 : i32, i32, i32, i32, i32
  }
  func.func @transform_1(%arg0: i32, %arg1: i32, %arg2: memref<12xi32, #tpu.memory_space<smem>>) -> (i32, i32, i32, i32) {
    %c0_i32 = arith.constant 0 : i32
    %c0_i32_0 = arith.constant 0 : i32
    %c0_i32_1 = arith.constant 0 : i32
    return %arg0, %c0_i32, %arg1, %c0_i32_0 : i32, i32, i32, i32
  }
}

</mosaic_0001>

<llo_original>
// kernel: tpu_custom_call.1
$region0: #{tpu_custom_call.1}
  #allocation0 [shape = 'u32[]', space=smem, size = 0x4, offset = 0x4, fixed_abs, tag = 'smem constant byte address 0x4 - core index']
  #allocation1 [shape = 'u32[72,128]{1,0:T(1,128)}', space=vmem, size = 0x9000, scoped, tag = 'internal scratch']
  #allocation2 [shape = 's32[1]{0}', space=sflag, size = 0x4, scoped, tag = 'scoped memory for tpu_custom_call.1']
  #allocation3 [shape = 'u8[512]{0}', space=smem, size = 0x200, scoped, tag = 'prefetched SMEM operand 0']
  %s0 = inlined_call_operand.hbm [shape: s32[12], index: 0, kind: input, shape index: {}]
  %s1 = inlined_call_operand.hbm [shape: f32[2,16,3,8,128], index: 1, kind: input, shape index: {}]
  %s2 = inlined_call_operand.hbm [shape: f32[2,3,16,384], index: 2, kind: output, shape index: {}]
  %s3 = sld [smem:[#allocation0]]
  $region41: #{tpu_custom_call.1} parent=0
    _
  %s5 = ssub.s32 1, %s3
  %s6 = scalar_select 0, %s5, %s3
  %s8 = sshll.u32 %s0, 4
  %s9 = int_to_ptr.hbm [resolvable:$true] %s8
  %11 = dma.hbm_to_smem %s9, 16, [#allocation3], [#allocation2]
  %13 = dma.done [#allocation2], 16
  %14 = sfence
  $region1: #{tpu_custom_call.1} parent=0
    #allocation4 [shape = 'u8[393216]{0}', space=vmem, size = 0x60000, scoped, tag = 'input window, operand 1']
    #allocation5 [shape = 's32[2]{0}', space=sflag, size = 0x8, scoped, tag = 'scoped memory for tpu_custom_call.1']
    #allocation6 [shape = 's32[2]{0}', space=sflag, size = 0x8, scoped, tag = 'scoped memory for tpu_custom_call.1']
    #allocation7 [shape = 'u8[73728]{0}', space=vmem, size = 0x12000, scoped, tag = 'output window, operand 0']
    %15 = vsyncpa [#allocation5], 0
    %s16 = scalar_lea.sflag [#allocation5], 1
    %17 = vsyncpa %s16, 0
    %18 = vsyncpa [#allocation6], 0
    %s19 = scalar_lea.sflag [#allocation6], 1
    %20 = vsyncpa %s19, 0
    loop: start=0, step=1, limit=6
    $region2: #{tpu_custom_call.1} parent=1 // loop_pre_header
      _
    $region3: #{tpu_custom_call.1} parent=1 // loop_header
      %s22 = sphi 0, %s26
      %p23 = scmp.ge.s32.totalorder %s22, 6
      %s29 = sphi 0, %s41
      %s30 = sphi 0, %s37
      %s31 = sphi 0, %s29
      %s32 = sphi 0, %s30
      %s33 = sphi 0, %s31
      %s34 = sphi 0, %s32
      %s44 = sphi 0, %s46
      %s47 = sphi 0, %s44
      %s48 = sphi 0, %s47
      %s64 = sphi 0, %s48
      %s72 = sphi 0, %s74
      %s75 = sphi 0, %s72
      %s76 = sphi 0, %s75
      %s92 = sphi 0, %s76
    $region4: #{tpu_custom_call.1} parent=1 // loop_header_branch
      %25 = sbr.rel (%p23) target = $region8
    $region5: #{tpu_custom_call.1} parent=1 // loop_body
      %s27 = ssub.s32 %s22, 1
      %s28 = ssub.s32 %s22, 2
      %s35 = sadd.s32 1, %s30
      %p36 = scmp.ge.s32.totalorder %s35, 2
      %s37 = scalar_select %p36, 0, %s35
      %s38 = sadd.s32 1, %s29
      %s39 = scalar_select %p36, %s38, %s29
      %p40 = scmp.ge.s32.totalorder %s39, 2
      %s41 = scalar_select %p40, 0, %s39
      %s42 = ssub.s32 %s29, %s41
      %p43 = scmp.eq.s32.totalorder %s42, 0
      %s45 = sadd.s32 %s44, 1
      %s46 = scalar_select %p43, %s44, %s45
      %p49 = pneg %p43
      %p50 = scmp.eq.s32.totalorder %s22, 3
      %p51 = por %p49, %p50
      %p52 = scmp.ne.s32.totalorder %s44, %s47
      %p53 = scmp.eq.s32.totalorder %s22, 0
      %p54 = por %p52, %p53
      %p55 = scmp.ne.s32.totalorder %s44, %s47
      %p56 = scmp.eq.s32.totalorder %s27, 3
      %p57 = por %p55, %p56
      %p58 = scmp.ne.s32.totalorder %s47, %s48
      %p59 = scmp.eq.s32.totalorder %s27, 0
      %p60 = por %p58, %p59
      %p61 = scmp.ne.s32.totalorder %s47, %s48
      %p62 = scmp.eq.s32.totalorder %s28, 3
      %p63 = por %p61, %p62
      %p65 = scmp.ne.s32.totalorder %s48, %s64
      %p66 = scmp.eq.s32.totalorder %s28, 0
      %p67 = por %p65, %p66
      %s68 = ssub.s32 %s29, %s41
      %s69 = ssub.s32 %s30, %s37
      %s70 = sor.u32 %s68, %s69
      %p71 = scmp.eq.s32.totalorder %s70, 0
      %s73 = sadd.s32 %s72, 1
      %s74 = scalar_select %p71, %s72, %s73
      %p77 = pneg %p71
      %p78 = scmp.eq.s32.totalorder %s22, 3
      %p79 = por %p77, %p78
      %p80 = scmp.ne.s32.totalorder %s72, %s75
      %p81 = scmp.eq.s32.totalorder %s22, 0
      %p82 = por %p80, %p81
      %p83 = scmp.ne.s32.totalorder %s72, %s75
      %p84 = scmp.eq.s32.totalorder %s27, 3
      %p85 = por %p83, %p84
      %p86 = scmp.ne.s32.totalorder %s75, %s76
      %p87 = scmp.eq.s32.totalorder %s27, 0
      %p88 = por %p86, %p87
      %p89 = scmp.ne.s32.totalorder %s75, %s76
      %p90 = scmp.eq.s32.totalorder %s28, 3
      %p91 = por %p89, %p90
      %p93 = scmp.ne.s32.totalorder %s76, %s92
      %p94 = scmp.eq.s32.totalorder %s28, 0
      %p95 = por %p93, %p94
      %p96 = scmp.le.s32.totalorder 1, %s22
      %p97 = scmp.lt.s32.totalorder %s22, 5
      %p98 = pnand %p96, %p97
      %p99 = pneg %p98
      // Predicated region
      $region9: #{tpu_custom_call.1} parent=5 // pred_check
        _
      $region10: #{tpu_custom_call.1} parent=5 // pred_check_branch
        %101 = sbr.rel (%p98) target = $region12
      $region11: #{tpu_custom_call.1} parent=5 // pred_region
        %s102 = ssub.s32 %s22, 1
      $region12: #{tpu_custom_call.1} parent=5 // pred_fallthru
        _
      %p103 = scmp.lt.s32.totalorder %s22, 4
      // Predicated region
      $region13: #{tpu_custom_call.1} parent=5 // pred_check
        %p104 = pneg %p103
      $region14: #{tpu_custom_call.1} parent=5 // pred_check_branch
        %106 = sbr.rel (%p104) target = $region16
      $region15: #{tpu_custom_call.1} parent=5 // pred_region
        // Predicated region
        $region17: #{tpu_custom_call.1} parent=15 // pred_check
          %p107 = pneg %p54
        $region18: #{tpu_custom_call.1} parent=15 // pred_check_branch
          %109 = sbr.rel (%p107) target = $region20
        $region19: #{tpu_custom_call.1} parent=15 // pred_region
          %s110 = sand.u32 %s44, 1
          %s111 = scalar_lea.sflag [#allocation5], %s110
          %s112 = sand.u32 %s44, 1
          %s113 = smul.addr %s112, 384
          %s114 = scalar_lea.vmem [#allocation4], %s113
          %116 = vsyncadd %s111, 0
          %s117 = smul.addr %s29, 48
          %s118 = smul.addr %s117, 8
          %s119 = scalar_lea.hbm %s1, %s118
          %s120 = sshll.u32 %s119, 4
          %s121 = int_to_ptr.hbm [resolvable:$true] %s120
          %s122 = sshll.u32 %s114, 4
          %s123 = int_to_ptr.vmem [resolvable:$true] %s122
          %128 = dma.hbm_to_vmem [thread:$0]  %s121, 6144, %s123, %s111, 128, 128, 8
        $region20: #{tpu_custom_call.1} parent=15 // pred_fallthru
          _
      $region16: #{tpu_custom_call.1} parent=5 // pred_fallthru
        _
      %p129 = scmp.le.s32.totalorder 1, %s22
      %p130 = scmp.lt.s32.totalorder %s22, 5
      %p131 = pnand %p129, %p130
      %p132 = pneg %p131
      // Predicated region
      $region21: #{tpu_custom_call.1} parent=5 // pred_check
        _
      $region22: #{tpu_custom_call.1} parent=5 // pred_check_branch
        %134 = sbr.rel (%p131) target = $region24
      $region23: #{tpu_custom_call.1} parent=5 // pred_region
        %s135 = ssub.s32 %s22, 1
        %s136 = sand.u32 %s47, 1
        %s137 = scalar_lea.sflag [#allocation5], %s136
        %s138 = sand.u32 %s47, 1
        %s139 = smul.addr %s138, 384
        %s140 = scalar_lea.vmem [#allocation4], %s139
        // Predicated region
        $region25: #{tpu_custom_call.1} parent=23 // pred_check
          %p141 = pneg %p60
        $region26: #{tpu_custom_call.1} parent=23 // pred_check_branch
          %143 = sbr.rel (%p141) target = $region28
        $region27: #{tpu_custom_call.1} parent=23 // pred_region
          %145 = dma.done %s137, 6144
        $region28: #{tpu_custom_call.1} parent=23 // pred_fallthru
          _
        %s146 = sand.u32 %s47, 1
        %s147 = scalar_lea.sflag [#allocation5], %s146
        %s148 = sand.u32 %s47, 1
        %s149 = smul.addr %s148, 384
        %s150 = scalar_lea.vmem [#allocation4], %s149
        %p151 = pneg %p60
        %p152 = pneg %p57
        %p153 = pneg %p88
        %p154 = pneg %p85
        %s155 = sand.u32 %s75, 1
        %s156 = scalar_lea.sflag [#allocation6], %s155
        %s157 = sand.u32 %s75, 1
        %s158 = smul.addr %s157, 72
        %s159 = scalar_lea.vmem [#allocation7], %s158
        %s160 = smul.u32 %s31, 2
        %s161 = sadd.s32 %s160, %s32
        %s162 = smul.u32 %s161, 3
        %s163 = sld [smem:[#allocation3 + %s162]]
        %s164 = smul.u32 %s163, 24
        %s165 = scalar_lea.vmem %s140, %s164 [#allocation4]
        %v166 = vld [vmem:[%s165] sm:$0xff]
        %v167 = vld [vmem:[%s165 + $0x8] sm:$0xff]
        %v168 = vld [vmem:[%s165 + $0x10] sm:$0xff]
        %169 = vst [vmem:[%s159] sm:$0xff] %v166
        %170 = vst [vmem:[%s159 + $0x18] sm:$0xff] %v167
        %171 = vst [vmem:[%s159 + $0x30] sm:$0xff] %v168
        %s172 = sadd.s32 %s162, 1
        %s173 = sld [smem:[#allocation3 + %s172]]
        %s174 = smul.u32 %s173, 24
        %s175 = scalar_lea.vmem %s140, %s174 [#allocation4]
        %v176 = vld [vmem:[%s175] sm:$0xff]
        %v177 = vld [vmem:[%s175 + $0x8] sm:$0xff]
        %v178 = vld [vmem:[%s175 + $0x10] sm:$0xff]
        %179 = vst [vmem:[%s159 + $0x8] sm:$0xff] %v176
        %180 = vst [vmem:[%s159 + $0x20] sm:$0xff] %v177
        %181 = vst [vmem:[%s159 + $0x38] sm:$0xff] %v178
        %s182 = sadd.s32 %s162, 2
        %s183 = sld [smem:[#allocation3 + %s182]]
        %s184 = smul.u32 %s183, 24
        %s185 = scalar_lea.vmem %s140, %s184 [#allocation4]
        %v186 = vld [vmem:[%s185] sm:$0xff]
        %v187 = vld [vmem:[%s185 + $0x8] sm:$0xff]
        %v188 = vld [vmem:[%s185 + $0x10] sm:$0xff]
        %189 = vst [vmem:[%s159 + $0x10] sm:$0xff] %v186
        %190 = vst [vmem:[%s159 + $0x28] sm:$0xff] %v187
        %191 = vst [vmem:[%s159 + $0x40] sm:$0xff] %v188
        %s192 = sand.u32 %s75, 1
        %s193 = scalar_lea.sflag [#allocation6], %s192
        %s194 = sand.u32 %s75, 1
        %s195 = smul.addr %s194, 72
        %s196 = scalar_lea.vmem [#allocation7], %s195
        // Predicated region
        $region29: #{tpu_custom_call.1} parent=23 // pred_check
          %p197 = pneg %p85
        $region30: #{tpu_custom_call.1} parent=23 // pred_check_branch
          %199 = sbr.rel (%p197) target = $region32
        $region31: #{tpu_custom_call.1} parent=23 // pred_region
          %201 = vsyncadd %s193, 0
          %s202 = smul.addr %s32, 3
          %s203 = smul.addr %s31, 18
          %s204 = sadd.s32 %s202, %s203
          %s205 = smul.addr %s204, 8
          %s206 = scalar_lea.hbm %s2, %s205
          %s207 = sshll.u32 %s196, 4
          %s208 = int_to_ptr.vmem [resolvable:$true] %s207
          %s209 = sshll.u32 %s206, 4
          %s210 = int_to_ptr.hbm [resolvable:$true] %s209
          %215 = dma.vmem_to_hbm [thread:$0]  %s208, 1152, %s210, %s193, 384, 768, 24
        $region32: #{tpu_custom_call.1} parent=23 // pred_fallthru
          _
      $region24: #{tpu_custom_call.1} parent=5 // pred_fallthru
        _
      %p216 = scmp.le.s32.totalorder 2, %s22
      // Predicated region
      $region33: #{tpu_custom_call.1} parent=5 // pred_check
        %p217 = pneg %p216
      $region34: #{tpu_custom_call.1} parent=5 // pred_check_branch
        %219 = sbr.rel (%p217) target = $region36
      $region35: #{tpu_custom_call.1} parent=5 // pred_region
        %s220 = ssub.s32 %s22, 2
        // Predicated region
        $region37: #{tpu_custom_call.1} parent=35 // pred_check
          %p221 = pneg %p91
        $region38: #{tpu_custom_call.1} parent=35 // pred_check_branch
          %223 = sbr.rel (%p221) target = $region40
        $region39: #{tpu_custom_call.1} parent=35 // pred_region
          %s224 = sand.u32 %s76, 1
          %s225 = scalar_lea.sflag [#allocation6], %s224
          %s226 = sand.u32 %s76, 1
          %s227 = smul.addr %s226, 72
          %s228 = scalar_lea.vmem [#allocation7], %s227
          %230 = dma.done %s225, 1152
        $region40: #{tpu_custom_call.1} parent=35 // pred_fallthru
          _
      $region36: #{tpu_custom_call.1} parent=5 // pred_fallthru
        _
    $region6: #{tpu_custom_call.1} parent=1 // loop_footer
      %s26 = sadd.s32 1, %s22
    $region7: #{tpu_custom_call.1} parent=1 // loop_footer_branch
      %21 = sbr.rel target = $region3
    $region8: #{tpu_custom_call.1} parent=1 // loop_exit
      _
    %231 = vsyncpa [#allocation5], 1
    %s232 = scalar_lea.sflag [#allocation5], 1
    %233 = vsyncpa %s232, 1
    %234 = vsyncpa [#allocation6], 1
    %s235 = scalar_lea.sflag [#allocation6], 1
    %236 = vsyncpa %s235, 1

</llo_original>
